<compile_context>
chip_gen: v7x
topology: tpu7x:2x2x1
jax: 0.10.0
libtpu: 0.0.40
codegen_flags: <defaults>
</compile_context>

<pallas_src>
import jax
import jax.numpy as jnp
from jax.experimental import pallas as pl
from jax.experimental.pallas import tpu as pltpu

NEGATIVE_SLOPE = -0.1   # matches the PyTorch module's negative_slope = -0.1


def _fused_pointwise_kernel(w_ref, b_ref, x_ref, o_ref):
    # w_ref: (C_in, C_out) f32 in SMEM   -- fused w1 @ w2
    # b_ref: (C_out,)      f32 in SMEM   -- fused b1 @ w2 + b2
    # x_ref: (1, C_in,  s_tile, 128) f32 in VMEM   (sublane+lane dense)
    # o_ref: (1, C_out, s_tile, 128) f32 in VMEM
    c_in, c_out = w_ref.shape

    # Hoist every SMEM scalar read out of the loops (read once, reuse).
    w = [[w_ref[ci, co] for co in range(c_out)] for ci in range(c_in)]
    b = [b_ref[co] for co in range(c_out)]

    # Each input channel is a dense (s_tile, 128) 2-D block -> full vregs.
    x = [x_ref[0, ci] for ci in range(c_in)]

    for co in range(c_out):                       # static unroll (c_out = 4)
        acc = x[0] * w[0][co]
        for ci in range(1, c_in):                 # static unroll (c_in = 2)
            acc = acc + x[ci] * w[ci][co]
        acc = acc + b[co]
        # leaky-relu (slope <= 1):  where(t > 0, t, slope*t) == max(t, slope*t)
        o_ref[0, co] = jnp.maximum(acc, acc * NEGATIVE_SLOPE)


def _choose_tiles(B, L, max_s_tile):
    """Pick the (rows-of-128) tile.  Returns (s_tile, n_row_blocks, R_pad)."""
    R = pl.cdiv(L, 128)                 # sublane rows after the (..., R, 128) reshape
    if R <= max_s_tile:
        s_tile = R                      # full extent (any value is legal)
    else:
        s_tile = max_s_tile             # multiple of 8 by construction
    n_blocks = pl.cdiv(R, s_tile)
    # v7x megacore: keep >= 2 grid steps so both TensorCores get work.
    if B * n_blocks < 2 and R >= 16:
        s_tile = ((R + 1) // 2 + 7) // 8 * 8
        n_blocks = pl.cdiv(R, s_tile)
    R_pad = n_blocks * s_tile
    return s_tile, n_blocks, R_pad


def model_forward(x_ncl, w1, b1, w2, b2, *, max_s_tile=1024):
    """x_ncl: (B, 2, L) float32.  Returns (B, 4, L) float32 (NCL layout).

    Per grid step (default max_s_tile=1024): input block 2*1024*128*4 = 1 MiB,
    output block 4*1024*128*4 = 2 MiB; double-buffered total ~6 MiB, safely
    under the scoped-VMEM defaults of v5e/v6e/v7x.
    """
    B, C_in, L = x_ncl.shape
    C2 = w2.shape[1]
    max_s_tile = max(8, (max_s_tile // 8) * 8)

    # Exact algebraic fusion of the two pointwise (k=1, s=1, p=0) transposed
    # convs: conv2(conv1(x)) == x @ (w1 @ w2) + (b1 @ w2 + b2).
    wf = jnp.dot(w1, w2).astype(jnp.float32)          # (C_in, C2)
    bf = (jnp.dot(b1, w2) + b2).astype(jnp.float32)   # (C2,)

    s_tile, n_blocks, R_pad = _choose_tiles(B, L, max_s_tile)
    L_pad = R_pad * 128

    # Zero-pad L up to a multiple of (s_tile * 128); padded lanes are computed
    # and then sliced away (elementwise op, so this is always correct).
    if L_pad != L:
        x_ncl = jnp.pad(x_ncl, ((0, 0), (0, 0), (0, L_pad - L)))
    x4 = x_ncl.reshape(B, C_in, R_pad, 128)

    out4 = pl.pallas_call(
        _fused_pointwise_kernel,
        out_shape=jax.ShapeDtypeStruct((B, C2, R_pad, 128), jnp.float32),
        grid=(B, n_blocks),
        in_specs=[
            pl.BlockSpec(memory_space=pltpu.MemorySpace.SMEM),   # fused weight
            pl.BlockSpec(memory_space=pltpu.MemorySpace.SMEM),   # fused bias
            pl.BlockSpec((1, C_in, s_tile, 128), lambda b, r: (b, 0, r, 0)),
        ],
        out_specs=pl.BlockSpec((1, C2, s_tile, 128), lambda b, r: (b, 0, r, 0)),
        compiler_params=pltpu.CompilerParams(
            dimension_semantics=("parallel", "parallel"),
            vmem_limit_bytes=32 * 1024 * 1024),
    )(wf, bf, x4)

    out = out4.reshape(B, C2, L_pad)
    if L_pad != L:
        out = out[:, :, :L]
    return out


def _reference(x, w1, b1, w2, b2):
    t1 = jnp.einsum("bcl,cd->bdl", x, w1) + b1[None, :, None]
    t2 = jnp.einsum("bcl,cd->bdl", t1, w2) + b2[None, :, None]
    return jnp.where(t2 > 0, t2, t2 * NEGATIVE_SLOPE)


if __name__ == "__main__":
    key = jax.random.PRNGKey(0)
    k_x, k_w1, k_b1, k_w2, k_b2, k_x2 = jax.random.split(key, 6)

    B, L = 2, 16
    C_in, C1, C2 = 2, 3, 4

    # PyTorch ConvTranspose1d weight shape is (C_in, C_out, K=1); K squeezed here.
    x = jax.random.normal(k_x, (B, C_in, L), dtype=jnp.float32)
    w1 = jax.random.normal(k_w1, (C_in, C1), dtype=jnp.float32) * 0.5
    b1 = jax.random.normal(k_b1, (C1,), dtype=jnp.float32) * 0.1
    w2 = jax.random.normal(k_w2, (C1, C2), dtype=jnp.float32) * 0.5
    b2 = jax.random.normal(k_b2, (C2,), dtype=jnp.float32) * 0.1

    # Small-shape check (L padded 16 -> 128, single full-extent block).
    out = model_forward(x, w1, b1, w2, b2)
    jax.block_until_ready(out)
    ref = _reference(x, w1, b1, w2, b2)
    assert out.shape == (B, C2, L)
    assert jnp.allclose(out, ref, atol=1e-5, rtol=1e-5)

    # Larger, unaligned-L check exercising lane padding (5000 -> 6144), row
    # padding (40 -> 48 rows) and a multi-step (B, n_row_blocks) grid.
    L_big = 5000
    x_big = jax.random.normal(k_x2, (B, C_in, L_big), dtype=jnp.float32)
    out_big = model_forward(x_big, w1, b1, w2, b2, max_s_tile=16)
    jax.block_until_ready(out_big)
    ref_big = _reference(x_big, w1, b1, w2, b2)
    assert out_big.shape == (B, C2, L_big)
    assert jnp.allclose(out_big, ref_big, atol=1e-5, rtol=1e-5)

    print("KERNEL_OK")
</pallas_src>

<mosaic_0001>
module attributes {stable_mosaic.version = 11 : i64} {
  func.func @_fused_pointwise_kernel(%arg0: i32, %arg1: i32, %arg2: memref<2x4xf32, #tpu.memory_space<smem>>, %arg3: memref<4xf32, #tpu.memory_space<smem>>, %arg4: memref<1x2x1x128xf32, #tpu.memory_space<vmem>>, %arg5: memref<1x4x1x128xf32, #tpu.memory_space<vmem>>) attributes {dimension_semantics = [#tpu.dimension_semantics<parallel>, #tpu.dimension_semantics<parallel>], iteration_bounds = array<i64: 2, 1>, scalar_prefetch = 0 : i64, scratch_operands = 0 : i64, tpu.core_type = #tpu.core_type<tc>, window_params = [{transform_indices = @transform_0, window_bounds = array<i64: 2, 4>}, {transform_indices = @transform_1, window_bounds = array<i64: 4>}, {transform_indices = @transform_2, window_bounds = array<i64: 1, 2, 1, 128>}, {transform_indices = @transform_3, window_bounds = array<i64: 1, 4, 1, 128>}]} {
    %c0 = arith.constant 0 : index
    %c0_0 = arith.constant 0 : index
    %0 = memref.load %arg2[%c0, %c0_0] : memref<2x4xf32, #tpu.memory_space<smem>>
    %c0_1 = arith.constant 0 : index
    %c1 = arith.constant 1 : index
    %1 = memref.load %arg2[%c0_1, %c1] : memref<2x4xf32, #tpu.memory_space<smem>>
    %c0_2 = arith.constant 0 : index
    %c2 = arith.constant 2 : index
    %2 = memref.load %arg2[%c0_2, %c2] : memref<2x4xf32, #tpu.memory_space<smem>>
    %c0_3 = arith.constant 0 : index
    %c3 = arith.constant 3 : index
    %3 = memref.load %arg2[%c0_3, %c3] : memref<2x4xf32, #tpu.memory_space<smem>>
    %c1_4 = arith.constant 1 : index
    %c0_5 = arith.constant 0 : index
    %4 = memref.load %arg2[%c1_4, %c0_5] : memref<2x4xf32, #tpu.memory_space<smem>>
    %c1_6 = arith.constant 1 : index
    %c1_7 = arith.constant 1 : index
    %5 = memref.load %arg2[%c1_6, %c1_7] : memref<2x4xf32, #tpu.memory_space<smem>>
    %c1_8 = arith.constant 1 : index
    %c2_9 = arith.constant 2 : index
    %6 = memref.load %arg2[%c1_8, %c2_9] : memref<2x4xf32, #tpu.memory_space<smem>>
    %c1_10 = arith.constant 1 : index
    %c3_11 = arith.constant 3 : index
    %7 = memref.load %arg2[%c1_10, %c3_11] : memref<2x4xf32, #tpu.memory_space<smem>>
    %c0_12 = arith.constant 0 : index
    %8 = memref.load %arg3[%c0_12] : memref<4xf32, #tpu.memory_space<smem>>
    %c1_13 = arith.constant 1 : index
    %9 = memref.load %arg3[%c1_13] : memref<4xf32, #tpu.memory_space<smem>>
    %c2_14 = arith.constant 2 : index
    %10 = memref.load %arg3[%c2_14] : memref<4xf32, #tpu.memory_space<smem>>
    %c3_15 = arith.constant 3 : index
    %11 = memref.load %arg3[%c3_15] : memref<4xf32, #tpu.memory_space<smem>>
    %c0_16 = arith.constant 0 : index
    %c0_17 = arith.constant 0 : index
    %c0_18 = arith.constant 0 : index
    %c0_19 = arith.constant 0 : index
    %12 = vector.load %arg4[%c0_16, %c0_17, %c0_18, %c0_19] : memref<1x2x1x128xf32, #tpu.memory_space<vmem>>, vector<1x1x1x128xf32>
    %13 = vector.shape_cast %12 : vector<1x1x1x128xf32> to vector<1x128xf32>
    %c0_20 = arith.constant 0 : index
    %c1_21 = arith.constant 1 : index
    %c0_22 = arith.constant 0 : index
    %c0_23 = arith.constant 0 : index
    %14 = vector.load %arg4[%c0_20, %c1_21, %c0_22, %c0_23] : memref<1x2x1x128xf32, #tpu.memory_space<vmem>>, vector<1x1x1x128xf32>
    %15 = vector.shape_cast %14 : vector<1x1x1x128xf32> to vector<1x128xf32>
    %16 = vector.broadcast %0 : f32 to vector<1x128xf32>
    %17 = arith.mulf %13, %16 : vector<1x128xf32>
    %18 = vector.broadcast %4 : f32 to vector<1x128xf32>
    %19 = arith.mulf %15, %18 : vector<1x128xf32>
    %20 = arith.addf %17, %19 : vector<1x128xf32>
    %21 = vector.broadcast %8 : f32 to vector<1x128xf32>
    %22 = arith.addf %20, %21 : vector<1x128xf32>
    %cst = arith.constant -1.000000e-01 : f32
    %23 = vector.broadcast %cst : f32 to vector<1x128xf32>
    %24 = arith.mulf %22, %23 : vector<1x128xf32>
    %25 = arith.maximumf %22, %24 : vector<1x128xf32>
    %c0_24 = arith.constant 0 : index
    %c0_25 = arith.constant 0 : index
    %c0_26 = arith.constant 0 : index
    %c0_27 = arith.constant 0 : index
    %26 = vector.load %arg5[%c0_24, %c0_25, %c0_26, %c0_27] : memref<1x4x1x128xf32, #tpu.memory_space<vmem>>, vector<1x1x1x128xf32>
    %27 = vector.shape_cast %26 : vector<1x1x1x128xf32> to vector<1x128xf32>
    %28 = vector.shape_cast %25 : vector<1x128xf32> to vector<1x1x1x128xf32>
    tpu.vector_store %arg5[%c0_24, %c0_25, %c0_26, %c0_27], %28 {strides = array<i32>} : memref<1x4x1x128xf32, #tpu.memory_space<vmem>>, vector<1x1x1x128xf32>,
    %29 = vector.broadcast %1 : f32 to vector<1x128xf32>
    %30 = arith.mulf %13, %29 : vector<1x128xf32>
    %31 = vector.broadcast %5 : f32 to vector<1x128xf32>
    %32 = arith.mulf %15, %31 : vector<1x128xf32>
    %33 = arith.addf %30, %32 : vector<1x128xf32>
    %34 = vector.broadcast %9 : f32 to vector<1x128xf32>
    %35 = arith.addf %33, %34 : vector<1x128xf32>
    %cst_28 = arith.constant -1.000000e-01 : f32
    %36 = vector.broadcast %cst_28 : f32 to vector<1x128xf32>
    %37 = arith.mulf %35, %36 : vector<1x128xf32>
    %38 = arith.maximumf %35, %37 : vector<1x128xf32>
    %c0_29 = arith.constant 0 : index
    %c1_30 = arith.constant 1 : index
    %c0_31 = arith.constant 0 : index
    %c0_32 = arith.constant 0 : index
    %39 = vector.load %arg5[%c0_29, %c1_30, %c0_31, %c0_32] : memref<1x4x1x128xf32, #tpu.memory_space<vmem>>, vector<1x1x1x128xf32>
    %40 = vector.shape_cast %39 : vector<1x1x1x128xf32> to vector<1x128xf32>
    %41 = vector.shape_cast %38 : vector<1x128xf32> to vector<1x1x1x128xf32>
    tpu.vector_store %arg5[%c0_29, %c1_30, %c0_31, %c0_32], %41 {strides = array<i32>} : memref<1x4x1x128xf32, #tpu.memory_space<vmem>>, vector<1x1x1x128xf32>,
    %42 = vector.broadcast %2 : f32 to vector<1x128xf32>
    %43 = arith.mulf %13, %42 : vector<1x128xf32>
    %44 = vector.broadcast %6 : f32 to vector<1x128xf32>
    %45 = arith.mulf %15, %44 : vector<1x128xf32>
    %46 = arith.addf %43, %45 : vector<1x128xf32>
    %47 = vector.broadcast %10 : f32 to vector<1x128xf32>
    %48 = arith.addf %46, %47 : vector<1x128xf32>
    %cst_33 = arith.constant -1.000000e-01 : f32
    %49 = vector.broadcast %cst_33 : f32 to vector<1x128xf32>
    %50 = arith.mulf %48, %49 : vector<1x128xf32>
    %51 = arith.maximumf %48, %50 : vector<1x128xf32>
    %c0_34 = arith.constant 0 : index
    %c2_35 = arith.constant 2 : index
    %c0_36 = arith.constant 0 : index
    %c0_37 = arith.constant 0 : index
    %52 = vector.load %arg5[%c0_34, %c2_35, %c0_36, %c0_37] : memref<1x4x1x128xf32, #tpu.memory_space<vmem>>, vector<1x1x1x128xf32>
    %53 = vector.shape_cast %52 : vector<1x1x1x128xf32> to vector<1x128xf32>
    %54 = vector.shape_cast %51 : vector<1x128xf32> to vector<1x1x1x128xf32>
    tpu.vector_store %arg5[%c0_34, %c2_35, %c0_36, %c0_37], %54 {strides = array<i32>} : memref<1x4x1x128xf32, #tpu.memory_space<vmem>>, vector<1x1x1x128xf32>,
    %55 = vector.broadcast %3 : f32 to vector<1x128xf32>
    %56 = arith.mulf %13, %55 : vector<1x128xf32>
    %57 = vector.broadcast %7 : f32 to vector<1x128xf32>
    %58 = arith.mulf %15, %57 : vector<1x128xf32>
    %59 = arith.addf %56, %58 : vector<1x128xf32>
    %60 = vector.broadcast %11 : f32 to vector<1x128xf32>
    %61 = arith.addf %59, %60 : vector<1x128xf32>
    %cst_38 = arith.constant -1.000000e-01 : f32
    %62 = vector.broadcast %cst_38 : f32 to vector<1x128xf32>
    %63 = arith.mulf %61, %62 : vector<1x128xf32>
    %64 = arith.maximumf %61, %63 : vector<1x128xf32>
    %c0_39 = arith.constant 0 : index
    %c3_40 = arith.constant 3 : index
    %c0_41 = arith.constant 0 : index
    %c0_42 = arith.constant 0 : index
    %65 = vector.load %arg5[%c0_39, %c3_40, %c0_41, %c0_42] : memref<1x4x1x128xf32, #tpu.memory_space<vmem>>, vector<1x1x1x128xf32>
    %66 = vector.shape_cast %65 : vector<1x1x1x128xf32> to vector<1x128xf32>
    %67 = vector.shape_cast %64 : vector<1x128xf32> to vector<1x1x1x128xf32>
    tpu.vector_store %arg5[%c0_39, %c3_40, %c0_41, %c0_42], %67 {strides = array<i32>} : memref<1x4x1x128xf32, #tpu.memory_space<vmem>>, vector<1x1x1x128xf32>,
    return
  }
  func.func @transform_0(%arg0: i32, %arg1: i32) -> (i32, i32) {
    %c0_i32 = arith.constant 0 : i32
    %c0_i32_0 = arith.constant 0 : i32
    %c0_i32_1 = arith.constant 0 : i32
    return %c0_i32, %c0_i32_0 : i32, i32
  }
  func.func @transform_1(%arg0: i32, %arg1: i32) -> i32 {
    %c0_i32 = arith.constant 0 : i32
    %c0_i32_0 = arith.constant 0 : i32
    return %c0_i32 : i32
  }
  func.func @transform_2(%arg0: i32, %arg1: i32) -> (i32, i32, i32, i32) {
    %c0_i32 = arith.constant 0 : i32
    %c0_i32_0 = arith.constant 0 : i32
    %c0_i32_1 = arith.constant 0 : i32
    return %arg0, %c0_i32, %arg1, %c0_i32_0 : i32, i32, i32, i32
  }
  func.func @transform_3(%arg0: i32, %arg1: i32) -> (i32, i32, i32, i32) {
    %c0_i32 = arith.constant 0 : i32
    %c0_i32_0 = arith.constant 0 : i32
    %c0_i32_1 = arith.constant 0 : i32
    return %arg0, %c0_i32, %arg1, %c0_i32_0 : i32, i32, i32, i32
  }
}

</mosaic_0001>

<llo_original>
// kernel: tpu_custom_call.1
$region0: #{tpu_custom_call.1}
  #allocation0 [shape = 'u32[]', space=smem, size = 0x4, offset = 0x4, fixed_abs, tag = 'smem constant byte address 0x4 - core index']
  #allocation1 [shape = 'u32[144,128]{1,0:T(1,128)}', space=vmem, size = 0x12000, scoped, tag = 'internal scratch']
  %s0 = inlined_call_operand.hbm [shape: f32[2,4], index: 0, kind: input, shape index: {}]
  %s1 = inlined_call_operand.vmem [shape: f32[4], index: 1, kind: input, shape index: {}]
  %s2 = inlined_call_operand.vmem [shape: f32[2,2,1,128], index: 2, kind: input, shape index: {}]
  %s3 = inlined_call_operand.hbm [shape: f32[2,4,1,128], index: 3, kind: output, shape index: {}]
  %s4 = sld [smem:[#allocation0]]
  $region53: #{tpu_custom_call.1} parent=0
    _
  %s6 = ssub.s32 1, %s4
  %s7 = scalar_select 0, %s6, %s4
  $region1: #{tpu_custom_call.1} parent=0
    #allocation2 [shape = 'u8[1024]{0}', space=smem, size = 0x400, scoped, tag = 'input window, operand 0, single buffered']
    #allocation3 [shape = 's32[2]{0}', space=sflag, size = 0x8, scoped, tag = 'scoped memory for tpu_custom_call.1']
    #allocation4 [shape = 's32[2]{0}', space=sflag, size = 0x8, scoped, tag = 'scoped memory for tpu_custom_call.1']
    #allocation5 [shape = 's32[2]{0}', space=sflag, size = 0x8, scoped, tag = 'scoped memory for tpu_custom_call.1']
    #allocation6 [shape = 'u8[512]{0}', space=smem, size = 0x200, scoped, tag = 'input window, operand 1, single buffered']
    #allocation7 [shape = 'u8[4096]{0}', space=vmem, size = 0x1000, scoped, tag = 'output window, operand 0']
    %8 = vsyncpa [#allocation4], 0
    %9 = vsyncpa [#allocation5], 0
    %10 = vsyncpa [#allocation3], 0
    %s11 = scalar_lea.sflag [#allocation3], 1
    %12 = vsyncpa %s11, 0
    loop: start=0, step=1, limit=4
    $region2: #{tpu_custom_call.1} parent=1 // loop_pre_header
      _
    $region3: #{tpu_custom_call.1} parent=1 // loop_header
      %s14 = sphi 0, %s18
      %p15 = scmp.ge.s32.totalorder %s14, 4
      %s21 = sphi 0, %s33
      %s22 = sphi 0, %s29
      %s23 = sphi 0, %s21
      %s24 = sphi 0, %s22
      %s25 = sphi 0, %s23
      %s26 = sphi 0, %s24
      %s34 = sphi 0, %s34
      %s36 = sphi 0, %s34
      %s37 = sphi 0, %s36
      %s51 = sphi 0, %s37
      %s55 = sphi 0, %s55
      %s57 = sphi 0, %s55
      %s58 = sphi 0, %s57
      %s72 = sphi 0, %s58
      %s80 = sphi 0, %s82
      %s83 = sphi 0, %s80
      %s84 = sphi 0, %s83
      %s100 = sphi 0, %s84
      %s108 = sphi 0, %s110
      %s111 = sphi 0, %s108
      %s112 = sphi 0, %s111
      %s128 = sphi 0, %s112
    $region4: #{tpu_custom_call.1} parent=1 // loop_header_branch
      %17 = sbr.rel (%p15) target = $region8
    $region5: #{tpu_custom_call.1} parent=1 // loop_body
      %s19 = ssub.s32 %s14, 1
      %s20 = ssub.s32 %s14, 2
      %s27 = sadd.s32 1, %s22
      %p28 = scmp.ge.s32.totalorder %s27, 1
      %s29 = scalar_select %p28, 0, %s27
      %s30 = sadd.s32 1, %s21
      %s31 = scalar_select %p28, %s30, %s21
      %p32 = scmp.ge.s32.totalorder %s31, 2
      %s33 = scalar_select %p32, 0, %s31
      %s35 = sadd.s32 %s34, 1
      %p38 = scmp.eq.s32.totalorder %s14, 1
      %p39 = scmp.ne.s32.totalorder %s34, %s36
      %p40 = scmp.eq.s32.totalorder %s14, 0
      %p41 = por %p39, %p40
      %p42 = scmp.ne.s32.totalorder %s34, %s36
      %p43 = scmp.eq.s32.totalorder %s19, 1
      %p44 = por %p42, %p43
      %p45 = scmp.ne.s32.totalorder %s36, %s37
      %p46 = scmp.eq.s32.totalorder %s19, 0
      %p47 = por %p45, %p46
      %p48 = scmp.ne.s32.totalorder %s36, %s37
      %p49 = scmp.eq.s32.totalorder %s20, 1
      %p50 = por %p48, %p49
      %p52 = scmp.ne.s32.totalorder %s37, %s51
      %p53 = scmp.eq.s32.totalorder %s20, 0
      %p54 = por %p52, %p53
      %s56 = sadd.s32 %s55, 1
      %p59 = scmp.eq.s32.totalorder %s14, 1
      %p60 = scmp.ne.s32.totalorder %s55, %s57
      %p61 = scmp.eq.s32.totalorder %s14, 0
      %p62 = por %p60, %p61
      %p63 = scmp.ne.s32.totalorder %s55, %s57
      %p64 = scmp.eq.s32.totalorder %s19, 1
      %p65 = por %p63, %p64
      %p66 = scmp.ne.s32.totalorder %s57, %s58
      %p67 = scmp.eq.s32.totalorder %s19, 0
      %p68 = por %p66, %p67
      %p69 = scmp.ne.s32.totalorder %s57, %s58
      %p70 = scmp.eq.s32.totalorder %s20, 1
      %p71 = por %p69, %p70
      %p73 = scmp.ne.s32.totalorder %s58, %s72
      %p74 = scmp.eq.s32.totalorder %s20, 0
      %p75 = por %p73, %p74
      %s76 = ssub.s32 %s21, %s33
      %s77 = ssub.s32 %s22, %s29
      %s78 = sor.u32 %s76, %s77
      %p79 = scmp.eq.s32.totalorder %s78, 0
      %s81 = sadd.s32 %s80, 1
      %s82 = scalar_select %p79, %s80, %s81
      %p85 = pneg %p79
      %p86 = scmp.eq.s32.totalorder %s14, 1
      %p87 = por %p85, %p86
      %p88 = scmp.ne.s32.totalorder %s80, %s83
      %p89 = scmp.eq.s32.totalorder %s14, 0
      %p90 = por %p88, %p89
      %p91 = scmp.ne.s32.totalorder %s80, %s83
      %p92 = scmp.eq.s32.totalorder %s19, 1
      %p93 = por %p91, %p92
      %p94 = scmp.ne.s32.totalorder %s83, %s84
      %p95 = scmp.eq.s32.totalorder %s19, 0
      %p96 = por %p94, %p95
      %p97 = scmp.ne.s32.totalorder %s83, %s84
      %p98 = scmp.eq.s32.totalorder %s20, 1
      %p99 = por %p97, %p98
      %p101 = scmp.ne.s32.totalorder %s84, %s100
      %p102 = scmp.eq.s32.totalorder %s20, 0
      %p103 = por %p101, %p102
      %s104 = ssub.s32 %s21, %s33
      %s105 = ssub.s32 %s22, %s29
      %s106 = sor.u32 %s104, %s105
      %p107 = scmp.eq.s32.totalorder %s106, 0
      %s109 = sadd.s32 %s108, 1
      %s110 = scalar_select %p107, %s108, %s109
      %p113 = pneg %p107
      %p114 = scmp.eq.s32.totalorder %s14, 1
      %p115 = por %p113, %p114
      %p116 = scmp.ne.s32.totalorder %s108, %s111
      %p117 = scmp.eq.s32.totalorder %s14, 0
      %p118 = por %p116, %p117
      %p119 = scmp.ne.s32.totalorder %s108, %s111
      %p120 = scmp.eq.s32.totalorder %s19, 1
      %p121 = por %p119, %p120
      %p122 = scmp.ne.s32.totalorder %s111, %s112
      %p123 = scmp.eq.s32.totalorder %s19, 0
      %p124 = por %p122, %p123
      %p125 = scmp.ne.s32.totalorder %s111, %s112
      %p126 = scmp.eq.s32.totalorder %s20, 1
      %p127 = por %p125, %p126
      %p129 = scmp.ne.s32.totalorder %s112, %s128
      %p130 = scmp.eq.s32.totalorder %s20, 0
      %p131 = por %p129, %p130
      %p132 = scmp.le.s32.totalorder 1, %s14
      %p133 = scmp.lt.s32.totalorder %s14, 3
      %p134 = pnand %p132, %p133
      %p135 = pneg %p134
      // Predicated region
      $region9: #{tpu_custom_call.1} parent=5 // pred_check
        _
      $region10: #{tpu_custom_call.1} parent=5 // pred_check_branch
        %137 = sbr.rel (%p134) target = $region12
      $region11: #{tpu_custom_call.1} parent=5 // pred_region
        %s138 = ssub.s32 %s14, 1
        // Predicated region
        $region13: #{tpu_custom_call.1} parent=11 // pred_check
          %p139 = pneg %p47
        $region14: #{tpu_custom_call.1} parent=11 // pred_check_branch
          %141 = sbr.rel (%p139) target = $region16
        $region15: #{tpu_custom_call.1} parent=11 // pred_region
          %s143 = ssub.s32 32, 32
          %144 = vsyncadd [#allocation4], %s143
          %147 = dma.hbm_to_smem %s0, 32, [#allocation2], [#allocation4]
        $region16: #{tpu_custom_call.1} parent=11 // pred_fallthru
          _
        // Predicated region
        $region17: #{tpu_custom_call.1} parent=11 // pred_check
          %p148 = pneg %p68
        $region18: #{tpu_custom_call.1} parent=11 // pred_check_branch
          %150 = sbr.rel (%p148) target = $region20
        $region19: #{tpu_custom_call.1} parent=11 // pred_region
          %s152 = ssub.s32 16, 16
          %153 = vsyncadd [#allocation5], %s152
          %s155 = sshll.u32 %s1, 4
          %s156 = int_to_ptr.vmem [resolvable:$true] %s155
          %158 = dma.vmem_to_smem %s156, 16, [#allocation6], [#allocation5]
        $region20: #{tpu_custom_call.1} parent=11 // pred_fallthru
          _
      $region12: #{tpu_custom_call.1} parent=5 // pred_fallthru
        _
      %p159 = scmp.lt.s32.totalorder %s14, 2
      // Predicated region
      $region21: #{tpu_custom_call.1} parent=5 // pred_check
        %p160 = pneg %p159
      $region22: #{tpu_custom_call.1} parent=5 // pred_check_branch
        %162 = sbr.rel (%p160) target = $region24
      $region23: #{tpu_custom_call.1} parent=5 // pred_region
        // Predicated region
        $region25: #{tpu_custom_call.1} parent=23 // pred_check
          %p163 = pneg %p90
        $region26: #{tpu_custom_call.1} parent=23 // pred_check_branch
          %165 = sbr.rel (%p163) target = $region28
        $region27: #{tpu_custom_call.1} parent=23 // pred_region
          %p166 = scmp.lt.s32.totalorder %s21, 1
          %s167 = scalar_select %p166, %s21, 1
          %p168 = scmp.lt.s32.totalorder %s22, 0
          %s169 = scalar_select %p168, %s22, 0
          %s170 = smul.addr %s167, 2
          %s171 = sadd.s32 %s169, %s170
          %s172 = scalar_lea.vmem %s2, %s171
        $region28: #{tpu_custom_call.1} parent=23 // pred_fallthru
          _
      $region24: #{tpu_custom_call.1} parent=5 // pred_fallthru
        _
      %p173 = scmp.le.s32.totalorder 1, %s14
      %p174 = scmp.lt.s32.totalorder %s14, 3
      %p175 = pnand %p173, %p174
      %p176 = pneg %p175
      // Predicated region
      $region29: #{tpu_custom_call.1} parent=5 // pred_check
        _
      $region30: #{tpu_custom_call.1} parent=5 // pred_check_branch
        %178 = sbr.rel (%p175) target = $region32
      $region31: #{tpu_custom_call.1} parent=5 // pred_region
        %s179 = ssub.s32 %s14, 1
        // Predicated region
        $region33: #{tpu_custom_call.1} parent=31 // pred_check
          %p180 = pneg %p47
        $region34: #{tpu_custom_call.1} parent=31 // pred_check_branch
          %182 = sbr.rel (%p180) target = $region36
        $region35: #{tpu_custom_call.1} parent=31 // pred_region
          %183 = dma.done [#allocation4], 32
        $region36: #{tpu_custom_call.1} parent=31 // pred_fallthru
          _
        // Predicated region
        $region37: #{tpu_custom_call.1} parent=31 // pred_check
          %p184 = pneg %p68
        $region38: #{tpu_custom_call.1} parent=31 // pred_check_branch
          %186 = sbr.rel (%p184) target = $region40
        $region39: #{tpu_custom_call.1} parent=31 // pred_region
          %187 = dma.done [#allocation5], 16
        $region40: #{tpu_custom_call.1} parent=31 // pred_fallthru
          _
        %188 = sfence
        %p189 = pneg %p47
        %p190 = pneg %p44
        %p191 = pneg %p68
        %p192 = pneg %p65
        %p193 = scmp.lt.s32.totalorder %s23, 1
        %s194 = scalar_select %p193, %s23, 1
        %p195 = scmp.lt.s32.totalorder %s24, 0
        %s196 = scalar_select %p195, %s24, 0
        %s197 = smul.addr %s194, 2
        %s198 = sadd.s32 %s196, %s197
        %s199 = scalar_lea.vmem %s2, %s198
        %p200 = pneg %p96
        %p201 = pneg %p93
        %p202 = pneg %p124
        %p203 = pneg %p121
        %s204 = sand.u32 %s111, 1
        %s205 = scalar_lea.sflag [#allocation3], %s204
        %s206 = sand.u32 %s111, 1
        %s207 = smul.addr %s206, 4
        %s208 = scalar_lea.vmem [#allocation7], %s207
        %p209 = scmp.lt.s32.totalorder %s23, 1
        %s210 = scalar_select %p209, %s23, 1
        %p211 = scmp.lt.s32.totalorder %s24, 0
        %s212 = scalar_select %p211, %s24, 0
        %s213 = smul.addr %s210, 2
        %s214 = sadd.s32 %s212, %s213
        %s215 = scalar_lea.vmem %s2, %s214
        %s216 = sld [smem:[#allocation2]]
        %s217 = sld [smem:[#allocation2 + $0x1]]
        %s218 = sld [smem:[#allocation2 + $0x2]]
        %s219 = sld [smem:[#allocation2 + $0x3]]
        %s220 = sld [smem:[#allocation2 + $0x80]]
        %s221 = sld [smem:[#allocation2 + $0x81]]
        %s222 = sld [smem:[#allocation2 + $0x82]]
        %s223 = sld [smem:[#allocation2 + $0x83]]
        %s224 = sld [smem:[#allocation6]]
        %s225 = sld [smem:[#allocation6 + $0x1]]
        %s226 = sld [smem:[#allocation6 + $0x2]]
        %s227 = sld [smem:[#allocation6 + $0x3]]
        %v228 = vld [vmem:[%s215] sm:$0x1]
        %s229 = scalar_lea.vmem %s215, 1
        %v230 = vld [vmem:[%s229] sm:$0x1]
        %v231 = vstv %s216
        %v232 = vmul.f32 %v228, %v231
        %v233 = vstv %s220
        %v234 = vmul.f32 %v230, %v233
        %v235 = vadd.f32 %v232, %v234
        %v236 = vstv %s224
        %v237 = vadd.f32 %v235, %v236
        %v238 = vmul.f32 %v237, -0.1
        %v239 = vmax.f32 %v237, %v238
        %240 = vst [vmem:[%s208] sm:$0x1] %v239
        %v241 = vstv %s217
        %v242 = vmul.f32 %v228, %v241
        %v243 = vstv %s221
        %v244 = vmul.f32 %v230, %v243
        %v245 = vadd.f32 %v242, %v244
        %v246 = vstv %s225
        %v247 = vadd.f32 %v245, %v246
        %v248 = vmul.f32 %v247, -0.1
        %v249 = vmax.f32 %v247, %v248
        %s250 = scalar_lea.vmem %s208, 1 [#allocation7]
        %251 = vst [vmem:[%s250] sm:$0x1] %v249
        %v252 = vstv %s218
        %v253 = vmul.f32 %v228, %v252
        %v254 = vstv %s222
        %v255 = vmul.f32 %v230, %v254
        %v256 = vadd.f32 %v253, %v255
        %v257 = vstv %s226
        %v258 = vadd.f32 %v256, %v257
        %v259 = vmul.f32 %v258, -0.1
        %v260 = vmax.f32 %v258, %v259
        %s261 = scalar_lea.vmem %s208, 2 [#allocation7]
        %262 = vst [vmem:[%s261] sm:$0x1] %v260
        %v263 = vstv %s219
        %v264 = vmul.f32 %v228, %v263
        %v265 = vstv %s223
        %v266 = vmul.f32 %v230, %v265
        %v267 = vadd.f32 %v264, %v266
        %v268 = vstv %s227
        %v269 = vadd.f32 %v267, %v268
        %v270 = vmul.f32 %v269, -0.1
        %v271 = vmax.f32 %v269, %v270
        %s272 = scalar_lea.vmem %s208, 3 [#allocation7]
        %273 = vst [vmem:[%s272] sm:$0x1] %v271
        %s274 = sand.u32 %s111, 1
        %s275 = scalar_lea.sflag [#allocation3], %s274
        %s276 = sand.u32 %s111, 1
        %s277 = smul.addr %s276, 4
        %s278 = scalar_lea.vmem [#allocation7], %s277
        // Predicated region
        $region41: #{tpu_custom_call.1} parent=31 // pred_check
          %p279 = pneg %p121
        $region42: #{tpu_custom_call.1} parent=31 // pred_check_branch
          %281 = sbr.rel (%p279) target = $region44
        $region43: #{tpu_custom_call.1} parent=31 // pred_region
          %s283 = ssub.s32 64, 64
          %284 = vsyncadd %s275, %s283
          %s285 = smul.addr %s23, 4
          %s286 = sadd.s32 %s24, %s285
          %s287 = smul.addr %s286, 16
          %s288 = scalar_lea.hbm %s3, %s287
          %s289 = sshll.u32 %s278, 4
          %s290 = int_to_ptr.vmem [resolvable:$true] %s289
          %295 = dma.vmem_to_hbm [thread:$0]  %s290, 64, %s288, %s275, 16, 16, 1
        $region44: #{tpu_custom_call.1} parent=31 // pred_fallthru
          _
      $region32: #{tpu_custom_call.1} parent=5 // pred_fallthru
        _
      %p296 = scmp.le.s32.totalorder 2, %s14
      // Predicated region
      $region45: #{tpu_custom_call.1} parent=5 // pred_check
        %p297 = pneg %p296
      $region46: #{tpu_custom_call.1} parent=5 // pred_check_branch
        %299 = sbr.rel (%p297) target = $region48
      $region47: #{tpu_custom_call.1} parent=5 // pred_region
        %s300 = ssub.s32 %s14, 2
        // Predicated region
        $region49: #{tpu_custom_call.1} parent=47 // pred_check
          %p301 = pneg %p127
        $region50: #{tpu_custom_call.1} parent=47 // pred_check_branch
          %303 = sbr.rel (%p301) target = $region52
        $region51: #{tpu_custom_call.1} parent=47 // pred_region
          %s304 = sand.u32 %s112, 1
          %s305 = scalar_lea.sflag [#allocation3], %s304
          %s306 = sand.u32 %s112, 1
          %s307 = smul.addr %s306, 4
          %s308 = scalar_lea.vmem [#allocation7], %s307
          %309 = dma.done %s305, 64
        $region52: #{tpu_custom_call.1} parent=47 // pred_fallthru
          _
      $region48: #{tpu_custom_call.1} parent=5 // pred_fallthru
        _
    $region6: #{tpu_custom_call.1} parent=1 // loop_footer
      %s18 = sadd.s32 1, %s14
    $region7: #{tpu_custom_call.1} parent=1 // loop_footer_branch
      %13 = sbr.rel target = $region3
    $region8: #{tpu_custom_call.1} parent=1 // loop_exit
      _
    %310 = vsyncpa [#allocation3], 1
    %s311 = scalar_lea.sflag [#allocation3], 1
    %312 = vsyncpa %s311, 1
    %313 = vsyncpa [#allocation4], 1
    %s314 = scalar_lea.sflag [#allocation4], 1
    %315 = vsyncpa %s314, 1
    %316 = vsyncpa [#allocation5], 1
    %s317 = scalar_lea.sflag [#allocation5], 1
    %318 = vsyncpa %s317, 1

</llo_original>
